<compile_context>
chip_gen: v7x
topology: tpu7x:2x2x1
jax: 0.10.0
libtpu: 0.0.40
codegen_flags: <defaults>
</compile_context>

<pallas_src>
import jax
import jax.numpy as jnp
from jax.experimental import pallas as pl
from jax.experimental.pallas import tpu as pltpu

_LANE = 128


def _round_up(x, m):
    return ((x + m - 1) // m) * m


def _choose_batch_tile(B, tile_b=None, max_tile=2048, min_grid_steps=2):
    """Pick a lane-aligned batch tile (multiple of 128) and the padded batch size."""
    if tile_b is not None:
        tile = _round_up(max(int(tile_b), _LANE), _LANE)
    else:
        b_lane = _round_up(max(B, _LANE), _LANE)
        tile = min(max_tile, b_lane)
        # v7x megacore: prefer >= 2 balanced grid steps when the batch allows it,
        # so the "parallel" axis actually feeds both TensorCores.
        if b_lane >= min_grid_steps * _LANE and b_lane // tile < min_grid_steps:
            tile = _round_up(pl.cdiv(b_lane, min_grid_steps), _LANE)
    b_pad = _round_up(max(B, tile), tile)
    return tile, b_pad


def policy_kernel(xT_ref, w1_ref, b1_ref, wh_ref, bh_ref, outT_ref):
    # fc1 + ReLU in transposed layout: (H, S) @ (S, tile_b) -> (H, tile_b).
    # bf16 MXU operands, f32 accumulation; bias / ReLU stay f32 on the VPU.
    h = jnp.dot(w1_ref[...], xT_ref[...], preferred_element_type=jnp.float32)
    h = jnp.maximum(h + b1_ref[...], 0.0)

    # Fused heads: one matmul for [mu | log_sigma]: (2A, H) @ (H, tile_b) -> (2A, tile_b).
    y = jnp.dot(wh_ref[...], h.astype(wh_ref.dtype),
                preferred_element_type=jnp.float32)
    y = y + bh_ref[...]

    # tanh (EUP) only on the mu rows; rows are exactly 2*action_dim (no padding),
    # so action_dim == shape[0] // 2 holds by construction.
    a = outT_ref.shape[0] // 2
    row = jax.lax.broadcasted_iota(jnp.int32, y.shape, 0)
    outT_ref[...] = jnp.where(row < a, jnp.tanh(y), y).astype(outT_ref.dtype)


def prepare_policy_params(params, compute_dtype=jnp.bfloat16):
    """One-time (per parameter set) preparation, hoisted out of the per-call path:
    fuse the two heads, reshape biases to column vectors, cast weights to bf16."""
    w1 = params["fc1_w"].astype(compute_dtype)                     # (H, S)
    b1 = params["fc1_b"].astype(jnp.float32).reshape(-1, 1)        # (H, 1)
    wh = jnp.concatenate([params["mu_w"], params["ls_w"]], axis=0).astype(compute_dtype)  # (2A, H)
    bh = jnp.concatenate([params["mu_b"], params["ls_b"]], axis=0).astype(jnp.float32).reshape(-1, 1)
    return {"w1": w1, "b1": b1, "wh": wh, "bh": bh}


def policy_net_forward(x, prepared, *, tile_b=None, out_dtype=jnp.float32,
                       return_fused=False):
    """x: (B, state_dim) f32. prepared: output of prepare_policy_params.

    Returns (mu, log_sigma), each (B, action_dim), unless return_fused=True in
    which case the fused (2*action_dim, B) slab is returned for lazy splitting.
    """
    B, state_dim = x.shape
    w1, b1, wh, bh = prepared["w1"], prepared["b1"], prepared["wh"], prepared["bh"]
    hidden_dim = w1.shape[0]
    out_dim = wh.shape[0]
    action_dim = out_dim // 2
    assert w1.shape[1] == state_dim

    tile, b_pad = _choose_batch_tile(B, tile_b)

    # Single small fused XLA op per call: cast -> transpose -> lane-pad.
    xT = x.astype(w1.dtype).T                                      # (S, B)
    if b_pad != B:
        xT = jnp.pad(xT, ((0, 0), (0, b_pad - B)))                 # (S, b_pad)

    grid = (b_pad // tile,)

    flops = 2 * b_pad * (state_dim * hidden_dim + hidden_dim * out_dim)
    bytes_accessed = (
        xT.size * xT.dtype.itemsize
        + w1.size * w1.dtype.itemsize
        + wh.size * wh.dtype.itemsize
        + b1.size * 4 + bh.size * 4
        + b_pad * out_dim * jnp.dtype(out_dtype).itemsize
    )

    outT = pl.pallas_call(
        policy_kernel,
        out_shape=jax.ShapeDtypeStruct((out_dim, b_pad), out_dtype),
        grid=grid,
        in_specs=[
            pl.BlockSpec((state_dim, tile), lambda i: (0, i)),       # x^T tile (lane-dense)
            pl.BlockSpec((hidden_dim, state_dim), lambda i: (0, 0)), # w1 resident
            pl.BlockSpec((hidden_dim, 1), lambda i: (0, 0)),         # b1 resident
            pl.BlockSpec((out_dim, hidden_dim), lambda i: (0, 0)),   # fused head W resident
            pl.BlockSpec((out_dim, 1), lambda i: (0, 0)),            # fused head b resident
        ],
        out_specs=pl.BlockSpec((out_dim, tile), lambda i: (0, i)),   # lane-dense output slab
        compiler_params=pltpu.CompilerParams(
            dimension_semantics=("parallel",),      # shard batch tiles across TCs on v7x
            vmem_limit_bytes=32 * 1024 * 1024,      # safe on v5e/v6e/v7x
        ),
        cost_estimate=pl.CostEstimate(
            flops=int(flops),
            transcendentals=int(b_pad * action_dim),
            bytes_accessed=int(bytes_accessed),
        ),
    )(xT, w1, b1, wh, bh)

    if return_fused:
        return outT[:, :B]                                          # (2A, B)
    mu = outT[:action_dim, :B].T                                    # (B, A)
    log_sigma = outT[action_dim:, :B].T                             # (B, A)
    return mu, log_sigma


def init_params(key, state_dim, hidden_dim, action_dim):
    """Deterministic init mimicking nn.Linear default U(-1/sqrt(fan_in), 1/sqrt(fan_in)).
    PyTorch-native layout: weight (out_features, in_features), bias (out_features,)."""
    ks = jax.random.split(key, 6)

    def lin(kw, kb, fan_in, fan_out):
        bound = 1.0 / jnp.sqrt(jnp.float32(fan_in))
        w = jax.random.uniform(kw, (fan_out, fan_in), jnp.float32, -bound, bound)
        b = jax.random.uniform(kb, (fan_out,), jnp.float32, -bound, bound)
        return w, b

    fc1_w, fc1_b = lin(ks[0], ks[1], state_dim, hidden_dim)
    mu_w, mu_b = lin(ks[2], ks[3], hidden_dim, action_dim)
    ls_w, ls_b = lin(ks[4], ks[5], hidden_dim, action_dim)
    return {"fc1_w": fc1_w, "fc1_b": fc1_b,
            "mu_w": mu_w, "mu_b": mu_b, "ls_w": ls_w, "ls_b": ls_b}


def policy_net_ref(x, p, compute_dtype=jnp.float32):
    """Pure-JAX reference. With compute_dtype=bfloat16 it applies the same input
    quantization as the kernel (f32 math on bf16-rounded operands)."""
    def q(a):
        return a.astype(compute_dtype).astype(jnp.float32)

    h = jnp.maximum(q(x) @ q(p["fc1_w"]).T + p["fc1_b"], 0.0)
    hq = q(h)
    mu = jnp.tanh(hq @ q(p["mu_w"]).T + p["mu_b"])
    ls = hq @ q(p["ls_w"]).T + p["ls_b"]
    return mu, ls


if __name__ == "__main__":
    key = jax.random.PRNGKey(0)
    k_params, k_x, k_x2 = jax.random.split(key, 3)

    # Small demo shapes consistent with a continuous-control actor.
    batch, state_dim, hidden_dim, action_dim = 50, 4, 32, 2
    raw = init_params(k_params, state_dim, hidden_dim, action_dim)
    prepared = prepare_policy_params(raw)     # hoisted: once per parameter set, not per call

    fwd = jax.jit(lambda xx: policy_net_forward(xx, prepared))

    x = jax.random.normal(k_x, (batch, state_dim), jnp.float32)
    mu, log_sigma = fwd(x)
    jax.block_until_ready((mu, log_sigma))

    assert mu.shape == (batch, action_dim)
    assert log_sigma.shape == (batch, action_dim)

    # Tight check vs a reference with matching bf16 input rounding.
    mu_m, ls_m = policy_net_ref(x, raw, compute_dtype=jnp.bfloat16)
    assert jnp.allclose(mu, mu_m, atol=1e-2), "mu mismatch (bf16-matched ref)"
    assert jnp.allclose(log_sigma, ls_m, atol=1e-2), "log_sigma mismatch (bf16-matched ref)"

    # Loose sanity check vs the pure-f32 reference (bf16 quantization error only).
    mu_f, ls_f = policy_net_ref(x, raw, compute_dtype=jnp.float32)
    assert jnp.allclose(mu, mu_f, atol=0.15), "mu far from f32 ref"
    assert jnp.allclose(log_sigma, ls_f, atol=0.15), "log_sigma far from f32 ref"

    # Second call reusing the prepared weights (no per-call fusion/casts), exercising a
    # multi-step "parallel" grid with batch padding (the v7x two-TensorCore path).
    batch2 = 300
    x2 = jax.random.normal(k_x2, (batch2, state_dim), jnp.float32)
    mu2, ls2 = policy_net_forward(x2, prepared)
    jax.block_until_ready((mu2, ls2))
    assert mu2.shape == (batch2, action_dim) and ls2.shape == (batch2, action_dim)
    mu2_m, ls2_m = policy_net_ref(x2, raw, compute_dtype=jnp.bfloat16)
    assert jnp.allclose(mu2, mu2_m, atol=1e-2), "mu mismatch (multi-step grid)"
    assert jnp.allclose(ls2, ls2_m, atol=1e-2), "log_sigma mismatch (multi-step grid)"

    print("KERNEL_OK")
</pallas_src>

<mosaic_0001>
module attributes {stable_mosaic.version = 11 : i64} {
  func.func @policy_kernel(%arg0: i32, %arg1: memref<4x128xbf16, #tpu.memory_space<vmem>>, %arg2: memref<32x4xbf16, #tpu.memory_space<vmem>>, %arg3: memref<32x1xf32, #tpu.memory_space<vmem>>, %arg4: memref<4x32xbf16, #tpu.memory_space<vmem>>, %arg5: memref<4x1xf32, #tpu.memory_space<vmem>>, %arg6: memref<4x128xf32, #tpu.memory_space<vmem>>) attributes {dimension_semantics = [#tpu.dimension_semantics<parallel>], iteration_bounds = array<i64: 1>, scalar_prefetch = 0 : i64, scratch_operands = 0 : i64, tpu.core_type = #tpu.core_type<tc>, window_params = [{transform_indices = @transform_0, window_bounds = array<i64: 4, 128>}, {pipeline_mode = #tpu.pipeline_mode<synchronous>, transform_indices = @transform_1, window_bounds = array<i64: 32, 4>}, {pipeline_mode = #tpu.pipeline_mode<synchronous>, transform_indices = @transform_2, window_bounds = array<i64: 32, 1>}, {pipeline_mode = #tpu.pipeline_mode<synchronous>, transform_indices = @transform_3, window_bounds = array<i64: 4, 32>}, {pipeline_mode = #tpu.pipeline_mode<synchronous>, transform_indices = @transform_4, window_bounds = array<i64: 4, 1>}, {transform_indices = @transform_5, window_bounds = array<i64: 4, 128>}]} {
    %c0 = arith.constant 0 : index
    %c0_0 = arith.constant 0 : index
    %0 = vector.load %arg2[%c0, %c0_0] : memref<32x4xbf16, #tpu.memory_space<vmem>>, vector<32x4xbf16>
    %c0_1 = arith.constant 0 : index
    %c0_2 = arith.constant 0 : index
    %1 = vector.load %arg1[%c0_1, %c0_2] : memref<4x128xbf16, #tpu.memory_space<vmem>>, vector<4x128xbf16>
    %cst = arith.constant dense<0.000000e+00> : vector<32x128xf32>
    %2 = tpu.matmul %0, %1, %cst {dimension_numbers = #tpu.dot_dimension_numbers<[1], [0], [0], [1], [0, 0, 1, 1], [], []>} : vector<32x4xbf16>, vector<4x128xbf16>, vector<32x128xf32> -> vector<32x128xf32>
    %c0_3 = arith.constant 0 : index
    %c0_4 = arith.constant 0 : index
    %3 = vector.load %arg3[%c0_3, %c0_4] : memref<32x1xf32, #tpu.memory_space<vmem>>, vector<32x1xf32>
    %4 = vector.broadcast %3 : vector<32x1xf32> to vector<32x128xf32>
    %5 = arith.addf %2, %4 : vector<32x128xf32>
    %cst_5 = arith.constant 0.000000e+00 : f32
    %6 = vector.broadcast %cst_5 : f32 to vector<32x128xf32>
    %7 = arith.maximumf %5, %6 : vector<32x128xf32>
    %c0_6 = arith.constant 0 : index
    %c0_7 = arith.constant 0 : index
    %8 = vector.load %arg4[%c0_6, %c0_7] : memref<4x32xbf16, #tpu.memory_space<vmem>>, vector<4x32xbf16>
    %9 = arith.truncf %7 : vector<32x128xf32> to vector<32x128xbf16>
    %cst_8 = arith.constant dense<0.000000e+00> : vector<4x128xf32>
    %10 = tpu.matmul %8, %9, %cst_8 {dimension_numbers = #tpu.dot_dimension_numbers<[1], [0], [0], [1], [0, 0, 1, 1], [], []>} : vector<4x32xbf16>, vector<32x128xbf16>, vector<4x128xf32> -> vector<4x128xf32>
    %c0_9 = arith.constant 0 : index
    %c0_10 = arith.constant 0 : index
    %11 = vector.load %arg5[%c0_9, %c0_10] : memref<4x1xf32, #tpu.memory_space<vmem>>, vector<4x1xf32>
    %12 = vector.broadcast %11 : vector<4x1xf32> to vector<4x128xf32>
    %13 = arith.addf %10, %12 : vector<4x128xf32>
    %14 = tpu.iota {dimensions = array<i32: 0>} : vector<4x128xi32>
    %c2_i32 = arith.constant 2 : i32
    %15 = vector.broadcast %c2_i32 : i32 to vector<4x128xi32>
    %16 = arith.cmpi slt, %14, %15 : vector<4x128xi32>
    %17 = math.tanh %13 : vector<4x128xf32>
    %18 = arith.select %16, %17, %13 : vector<4x128xi1>, vector<4x128xf32>
    %c0_11 = arith.constant 0 : index
    %c0_12 = arith.constant 0 : index
    %19 = vector.load %arg6[%c0_11, %c0_12] : memref<4x128xf32, #tpu.memory_space<vmem>>, vector<4x128xf32>
    tpu.vector_store %arg6[%c0_11, %c0_12], %18 {strides = array<i32>} : memref<4x128xf32, #tpu.memory_space<vmem>>, vector<4x128xf32>,
    return
  }
  func.func @transform_0(%arg0: i32) -> (i32, i32) {
    %c0_i32 = arith.constant 0 : i32
    %c0_i32_0 = arith.constant 0 : i32
    return %c0_i32, %arg0 : i32, i32
  }
  func.func @transform_1(%arg0: i32) -> (i32, i32) {
    %c0_i32 = arith.constant 0 : i32
    %c0_i32_0 = arith.constant 0 : i32
    %c0_i32_1 = arith.constant 0 : i32
    return %c0_i32, %c0_i32_0 : i32, i32
  }
  func.func @transform_2(%arg0: i32) -> (i32, i32) {
    %c0_i32 = arith.constant 0 : i32
    %c0_i32_0 = arith.constant 0 : i32
    %c0_i32_1 = arith.constant 0 : i32
    return %c0_i32, %c0_i32_0 : i32, i32
  }
  func.func @transform_3(%arg0: i32) -> (i32, i32) {
    %c0_i32 = arith.constant 0 : i32
    %c0_i32_0 = arith.constant 0 : i32
    %c0_i32_1 = arith.constant 0 : i32
    return %c0_i32, %c0_i32_0 : i32, i32
  }
  func.func @transform_4(%arg0: i32) -> (i32, i32) {
    %c0_i32 = arith.constant 0 : i32
    %c0_i32_0 = arith.constant 0 : i32
    %c0_i32_1 = arith.constant 0 : i32
    return %c0_i32, %c0_i32_0 : i32, i32
  }
  func.func @transform_5(%arg0: i32) -> (i32, i32) {
    %c0_i32 = arith.constant 0 : i32
    %c0_i32_0 = arith.constant 0 : i32
    return %c0_i32, %arg0 : i32, i32
  }
}

</mosaic_0001>

<llo_original>
// kernel: _lambda_.1
$region0: #{_lambda_.1}
  #allocation0 [shape = 'u32[]', space=smem, size = 0x4, offset = 0x4, fixed_abs, tag = 'smem constant byte address 0x4 - core index']
  #allocation1 [shape = 'u32[144,128]{1,0:T(1,128)}', space=vmem, size = 0x12000, scoped, tag = 'internal scratch']
  %s0 = inlined_call_operand.vmem [shape: bf16[4,128], index: 0, kind: input, shape index: {}]
  %s1 = inlined_call_operand.vmem [shape: bf16[32,4], index: 1, kind: input, shape index: {}]
  %s2 = inlined_call_operand.hbm [shape: f32[32,1], index: 2, kind: input, shape index: {}]
  %s3 = inlined_call_operand.vmem [shape: bf16[4,32], index: 3, kind: input, shape index: {}]
  %s4 = inlined_call_operand.vmem [shape: f32[4,1], index: 4, kind: input, shape index: {}]
  %s5 = inlined_call_operand.vmem [shape: f32[4,128], index: 5, kind: output, shape index: {}]
  %s6 = sld [smem:[#allocation0]]
  $region34: #{_lambda_.1} parent=0
    _
  %s8 = ssub.s32 1, %s6
  %s9 = scalar_select 0, %s8, %s6
  $region1: #{_lambda_.1} parent=0
    #allocation2 [shape = 'u8[16384]{0}', space=vmem, size = 0x4000, scoped, tag = 'input window, operand 2, single buffered']
    #allocation3 [shape = 's32[1]{0}', space=sflag, size = 0x4, scoped, tag = 'scoped memory for _lambda_.1']
    %10 = vsyncpa [#allocation3], 0
    // Predicated region
    $region2: #{_lambda_.1} parent=1 // pred_check
      _
    $region3: #{_lambda_.1} parent=1 // pred_check_branch
      %12 = sbr.rel (0) target = $region5
    $region4: #{_lambda_.1} parent=1 // pred_region
      _
    $region5: #{_lambda_.1} parent=1 // pred_fallthru
      _
    // Predicated region
    $region6: #{_lambda_.1} parent=1 // pred_check
      _
    $region7: #{_lambda_.1} parent=1 // pred_check_branch
      %14 = sbr.rel (0) target = $region9
    $region8: #{_lambda_.1} parent=1 // pred_region
      _
    $region9: #{_lambda_.1} parent=1 // pred_fallthru
      _
    // Predicated region
    $region10: #{_lambda_.1} parent=1 // pred_check
      _
    $region11: #{_lambda_.1} parent=1 // pred_check_branch
      %16 = sbr.rel (0) target = $region13
    $region12: #{_lambda_.1} parent=1 // pred_region
      %s18 = ssub.s32 512, 512
      %19 = vsyncadd [#allocation3], %s18
      %s20 = sshll.u32 [#allocation2], 4
      %s21 = int_to_ptr.vmem [resolvable:$true] %s20
      %26 = dma.hbm_to_vmem [thread:$0]  %s2, 512, %s21, [#allocation3], 128, 128, 8
    $region13: #{_lambda_.1} parent=1 // pred_fallthru
      _
    // Predicated region
    $region14: #{_lambda_.1} parent=1 // pred_check
      _
    $region15: #{_lambda_.1} parent=1 // pred_check_branch
      %28 = sbr.rel (0) target = $region17
    $region16: #{_lambda_.1} parent=1 // pred_region
      _
    $region17: #{_lambda_.1} parent=1 // pred_fallthru
      _
    // Predicated region
    $region18: #{_lambda_.1} parent=1 // pred_check
      _
    $region19: #{_lambda_.1} parent=1 // pred_check_branch
      %30 = sbr.rel (0) target = $region21
    $region20: #{_lambda_.1} parent=1 // pred_region
      _
    $region21: #{_lambda_.1} parent=1 // pred_fallthru
      _
    // Predicated region
    $region22: #{_lambda_.1} parent=1 // pred_check
      _
    $region23: #{_lambda_.1} parent=1 // pred_check_branch
      %32 = sbr.rel (0) target = $region25
    $region24: #{_lambda_.1} parent=1 // pred_region
      %33 = dma.done [#allocation3], 512
    $region25: #{_lambda_.1} parent=1 // pred_fallthru
      _
    %v35 = vld [vmem:[%s1] sm:$0xf]
    %v36 = vld [vmem:[%s1 + $0x4] sm:$0xf]
    %v37 = vld [vmem:[%s1 + $0x8] sm:$0xf]
    %v38 = vld [vmem:[%s1 + $0xc] sm:$0xf]
    %v39 = vld [vmem:[%s0] sm:$0x3]
    %v40 = vld [vmem:[#allocation2] sm:$0xff]
    %v41 = vld [vmem:[#allocation2 + $0x8] sm:$0xff]
    %v42 = vld [vmem:[#allocation2 + $0x10] sm:$0xff]
    %v43 = vld [vmem:[#allocation2 + $0x18] sm:$0xff]
    %45 = vset.pattern.permute.xlu0 0
    %46 = vperm.xlu0 %45, %v40
    %v47 = vpop.permute.xlu0 %46
    %50 = vset.pattern.permute.xlu0 0
    %51 = vperm.xlu0 %50, %v41
    %v52 = vpop.permute.xlu0 %51
    %55 = vset.pattern.permute.xlu0 0
    %56 = vperm.xlu0 %55, %v42
    %v57 = vpop.permute.xlu0 %56
    %60 = vset.pattern.permute.xlu0 0
    %61 = vperm.xlu0 %60, %v43
    %v62 = vpop.permute.xlu0 %61
    %v68 = vunpack.c.l.b16 %v35
    %v69 = vunpack.c.l.b16 %v36
    %v70 = vunpack.c.l.b16 %v37
    %v71 = vunpack.c.l.b16 %v38
    %v72 = vpack.c.b16 %v69, %v68
    %v73 = vpack.c.b16 %v71, %v70
    %vm74 = vcmask 31744
    %v76 = vsel %vm74, %v72, 0
    %v79 = vsel %vm74, %v73, 0
    %vm81 = vcmask 1041408
    %v83 = vsel %vm81, %v39, 0
    %85 = vmatprep.subr.bf16.mxu0 0
    %86 = vmatpush1.bf16.msra.mxu0 %v83
    %87 = vmatprep.subr.bf16.mxu0 0
    %88 = vmatpush1.bf16.msra.mxu0 0
    %89 = vmatprep.subr.bf16.mxu0 0
    %90 = vmatpush1.bf16.msra.mxu0 0
    %91 = vmatprep.subr.bf16.mxu0 0
    %92 = vmatpush1.bf16.msra.mxu0 0
    %93 = vmatprep.subr.bf16.mxu0 0
    %94 = vmatpush1.bf16.msra.mxu0 0
    %95 = vmatprep.subr.bf16.mxu0 0
    %96 = vmatpush1.bf16.msra.mxu0 0
    %97 = vmatprep.subr.bf16.mxu0 0
    %98 = vmatpush1.bf16.msra.mxu0 0
    %99 = vmatprep.subr.bf16.mxu0 0
    %100 = vmatpush1.bf16.msra.mxu0 0
    %101 = vmatprep.subr.bf16.mxu0 0
    %102 = vmatpush1.bf16.msra.mxu0 0
    %103 = vmatprep.subr.bf16.mxu0 0
    %104 = vmatpush1.bf16.msra.mxu0 0
    %105 = vmatprep.subr.bf16.mxu0 0
    %106 = vmatpush1.bf16.msra.mxu0 0
    %107 = vmatprep.subr.bf16.mxu0 0
    %108 = vmatpush1.bf16.msra.mxu0 0
    %109 = vmatprep.subr.bf16.mxu0 0
    %110 = vmatpush1.bf16.msra.mxu0 0
    %111 = vmatprep.subr.bf16.mxu0 0
    %112 = vmatpush1.bf16.msra.mxu0 0
    %113 = vmatprep.subr.bf16.mxu0 0
    %114 = vmatpush1.bf16.msra.mxu0 0
    %115 = vmatprep.subr.bf16.mxu0 0
    %116 = vmatpush1.bf16.msra.mxu0 0
    %117 = vmatprep.mubr.bf16.mxu0 0
    %118 = vmatmul.mubr.bf16.gmra.mrb[0].mxu0 %v76
    %v119 = vpop.f32.mrb[0].mxu0
    %v120 = vadd.f32 %v47, %v119
    %v121 = vpop.f32.mrb[0].mxu0
    %v122 = vpop.f32.mrb[0].mxu0
    %v123 = vadd.f32 %v52, %v122
    %v124 = vpop.f32.mrb[0].mxu0
    %125 = vmatprep.mubr.bf16.mxu0 0
    %126 = vmatmul.mubr.bf16.gmra.mrb[0].mxu0 %v79
    %v127 = vpop.f32.mrb[0].mxu0
    %v128 = vadd.f32 %v57, %v127
    %v129 = vpop.f32.mrb[0].mxu0
    %v130 = vpop.f32.mrb[0].mxu0
    %v131 = vadd.f32 %v62, %v130
    %v132 = vpop.f32.mrb[0].mxu0
    %133 = vdwg.mxu0
    %v134 = vmax.f32 %v120, 0.0
    %v135 = vmax.f32 %v123, 0.0
    %v136 = vmax.f32 %v128, 0.0
    %v137 = vmax.f32 %v131, 0.0
    %v138 = vld [vmem:[%s3] sm:$0x3]
    %v139 = vpack.c.bf16 %v135, %v134
    %v140 = vpack.c.bf16 %v137, %v136
    %v141 = vld [vmem:[%s4] sm:$0xf]
    %143 = vset.pattern.permute.xlu0 0
    %144 = vperm.xlu0 %143, %v141
    %v145 = vpop.permute.xlu0 %144
    %vm147 = vcmask 261120
    %v149 = vsel %vm147, %v138, 0
    %151 = vmatprep.subr.bf16.mxu0 0
    %152 = vmatpush1.bf16.msra.mxu0 %v139
    %153 = vmatprep.subr.bf16.mxu0 0
    %154 = vmatpush1.bf16.msra.mxu0 %v140
    %155 = vmatprep.subr.bf16.mxu0 0
    %156 = vmatpush1.bf16.msra.mxu0 0
    %157 = vmatprep.subr.bf16.mxu0 0
    %158 = vmatpush1.bf16.msra.mxu0 0
    %159 = vmatprep.subr.bf16.mxu0 0
    %160 = vmatpush1.bf16.msra.mxu0 0
    %161 = vmatprep.subr.bf16.mxu0 0
    %162 = vmatpush1.bf16.msra.mxu0 0
    %163 = vmatprep.subr.bf16.mxu0 0
    %164 = vmatpush1.bf16.msra.mxu0 0
    %165 = vmatprep.subr.bf16.mxu0 0
    %166 = vmatpush1.bf16.msra.mxu0 0
    %167 = vmatprep.subr.bf16.mxu0 0
    %168 = vmatpush1.bf16.msra.mxu0 0
    %169 = vmatprep.subr.bf16.mxu0 0
    %170 = vmatpush1.bf16.msra.mxu0 0
    %171 = vmatprep.subr.bf16.mxu0 0
    %172 = vmatpush1.bf16.msra.mxu0 0
    %173 = vmatprep.subr.bf16.mxu0 0
    %174 = vmatpush1.bf16.msra.mxu0 0
    %175 = vmatprep.subr.bf16.mxu0 0
    %176 = vmatpush1.bf16.msra.mxu0 0
    %177 = vmatprep.subr.bf16.mxu0 0
    %178 = vmatpush1.bf16.msra.mxu0 0
    %179 = vmatprep.subr.bf16.mxu0 0
    %180 = vmatpush1.bf16.msra.mxu0 0
    %181 = vmatprep.subr.bf16.mxu0 0
    %182 = vmatpush1.bf16.msra.mxu0 0
    %183 = vmatprep.mubr.bf16.mxu0 0
    %184 = vmatmul.mubr.bf16.gmra.mrb[0].mxu0 %v149
    %v185 = vpop.f32.mrb[0].mxu0
    %v186 = vadd.f32 %v145, %v185
    %v187 = vpop.f32.mrb[0].mxu0
    %v188 = vpop.f32.mrb[0].mxu0
    %v189 = vpop.f32.mrb[0].mxu0
    %190 = vdwg.mxu0
    %v191 = vlaneseq
    %v192 = vshrl.u32 %v191, 7
    %vm193 = vcmp.lt.s32.totalorder %v192, 2
    %v194 = vtanh.pop %v186
    %v195 = vsel %vm193, %v194, %v186
    %196 = vst [vmem:[%s5] sm:$0xf] %v195
    // Predicated region
    $region26: #{_lambda_.1} parent=1 // pred_check
      _
    $region27: #{_lambda_.1} parent=1 // pred_check_branch
      %198 = sbr.rel (0) target = $region29
    $region28: #{_lambda_.1} parent=1 // pred_region
      _
    $region29: #{_lambda_.1} parent=1 // pred_fallthru
      _
    // Predicated region
    $region30: #{_lambda_.1} parent=1 // pred_check
      _
    $region31: #{_lambda_.1} parent=1 // pred_check_branch
      %200 = sbr.rel (0) target = $region33
    $region32: #{_lambda_.1} parent=1 // pred_region
      _
    $region33: #{_lambda_.1} parent=1 // pred_fallthru
      _
    %201 = vsyncpa [#allocation3], 1

</llo_original>
